<compile_context>
chip_gen: v7x
topology: tpu7x:2x2x1
jax: 0.10.0
libtpu: 0.0.40
codegen_flags: <defaults>
</compile_context>

<pallas_src>
import math

import jax
import jax.numpy as jnp
from jax.experimental import pallas as pl
from jax.experimental.pallas import tpu as pltpu

EMBED_DIM = 32        # embedding_dim of the incoming features
PROJ_DIM = 256        # projection_dim (torch default)
LN_EPS = 1e-5         # torch.nn.LayerNorm default eps


# ----------------------------- fused Pallas kernel -------------------------------
def projection_head_kernel(x_ref, w_proj_ref, w_fc_ref, params_ref, o_ref):
    """Fused: (x @ Wp + bp) -> GELU -> (@ Wf + bf) -> +residual -> LayerNorm.

    params_ref rows: 0 = b_proj, 1 = b_fc, 2 = gamma, 3 = beta (all f32).
    Weights arrive as bf16; accumulation is f32 on the MXU.
    """
    b_proj = params_ref[0:1, :]
    b_fc = params_ref[1:2, :]
    gamma = params_ref[2:3, :]
    beta = params_ref[3:4, :]

    # projection: (TM, E)bf16 @ (E, P)bf16 -> f32, + (1, P)
    x_bf = x_ref[...].astype(jnp.bfloat16)
    projected = (
        jnp.dot(x_bf, w_proj_ref[...], preferred_element_type=jnp.float32)
        + b_proj
    )

    # TODO(synk): torch.nn.GELU() is exact erf GELU; tanh approximation is used
    #             here for Mosaic-safe lowering (max deviation ~1e-3).
    h = jax.nn.gelu(projected, approximate=True)

    # fc: (TM, P)bf16 @ (P, P)bf16 -> f32, + (1, P)
    y = (
        jnp.dot(h.astype(jnp.bfloat16), w_fc_ref[...],
                preferred_element_type=jnp.float32)
        + b_fc
    )

    # TODO(synk): dropout is a no-op in eval/inference mode, so it is omitted.
    y = y + projected                      # residual (f32)

    # LayerNorm over the last (lane) axis — single cross-lane pass:
    # var = E[y^2] - mu^2, with a precomputed 1/P constant.
    p = o_ref.shape[-1]
    inv_p = 1.0 / p
    s1 = jnp.sum(y, axis=-1, keepdims=True)
    s2 = jnp.sum(y * y, axis=-1, keepdims=True)
    mu = s1 * inv_p
    var = jnp.maximum(s2 * inv_p - mu * mu, 0.0)
    o_ref[...] = (y - mu) * jax.lax.rsqrt(var + LN_EPS) * gamma + beta


# ----------------------------- wrapper --------------------------------------------
def _choose_row_tile(n: int) -> int:
    """Row tile <= 512 (VMEM is plentiful at these widths), but keep >= 2 grid
    steps whenever N allows so the parallel axis shards across v7x's 2 TCs."""
    if n <= 8:
        return n                       # full batch, grid=(1,) — nothing to split
    if n <= 512:
        half = (((n + 1) // 2) + 7) // 8 * 8   # cdiv(n,2) rounded up to sublanes
        return min(half, n)
    return 512


def projection_head(x, w_proj, b_proj, w_fc, b_fc, gamma, beta):
    """x: (N, E) float32 -> (N, P) float32.  Entire forward in one pallas_call."""
    n, e = x.shape
    p = w_proj.shape[1]

    tm = _choose_row_tile(n)
    grid = (pl.cdiv(n, tm),)

    # Pack the four (P,) vectors into one (4, P) block -> single small DMA.
    params = jnp.stack([b_proj, b_fc, gamma, beta], axis=0).astype(jnp.float32)

    row_in = pl.BlockSpec((tm, e), lambda i: (i, 0))
    row_out = pl.BlockSpec((tm, p), lambda i: (i, 0))
    # Grid-constant operands: single-buffered (index_map is constant).
    w1_spec = pl.BlockSpec((e, p), lambda i: (0, 0), pipeline_mode=pl.Buffered(1))
    w2_spec = pl.BlockSpec((p, p), lambda i: (0, 0), pipeline_mode=pl.Buffered(1))
    prm_spec = pl.BlockSpec((4, p), lambda i: (0, 0), pipeline_mode=pl.Buffered(1))

    return pl.pallas_call(
        projection_head_kernel,
        out_shape=jax.ShapeDtypeStruct((n, p), jnp.float32),
        grid=grid,
        in_specs=[row_in, w1_spec, w2_spec, prm_spec],
        out_specs=row_out,
        compiler_params=pltpu.CompilerParams(
            dimension_semantics=("parallel",),   # shards rows across TCs on v7x
            vmem_limit_bytes=64 << 20),
    )(x, w_proj.astype(jnp.bfloat16), w_fc.astype(jnp.bfloat16), params)


# ----------------------------- reference (plain JAX, matching precision) -----------
def projection_head_ref(x, w_proj, b_proj, w_fc, b_fc, gamma, beta):
    projected = jnp.dot(x.astype(jnp.bfloat16), w_proj.astype(jnp.bfloat16),
                        preferred_element_type=jnp.float32) + b_proj
    h = jax.nn.gelu(projected, approximate=True)
    y = jnp.dot(h.astype(jnp.bfloat16), w_fc.astype(jnp.bfloat16),
                preferred_element_type=jnp.float32) + b_fc
    y = y + projected
    mu = jnp.mean(y, axis=-1, keepdims=True)
    var = jnp.mean((y - mu) ** 2, axis=-1, keepdims=True)
    return (y - mu) * jax.lax.rsqrt(var + LN_EPS) * gamma + beta


# ----------------------------- main -------------------------------------------------
if __name__ == "__main__":
    key = jax.random.PRNGKey(0)
    k_x, k_w1, k_b1, k_w2, k_b2 = jax.random.split(key, 5)

    B = 16  # sublane-aligned batch of feature rows (exercises grid=(2,))
    x = jax.random.normal(k_x, (B, EMBED_DIM), dtype=jnp.float32)

    # PyTorch-style Linear init (uniform +/- 1/sqrt(fan_in)); weights stored (in, out).
    lim1 = 1.0 / math.sqrt(EMBED_DIM)
    w_proj = jax.random.uniform(k_w1, (EMBED_DIM, PROJ_DIM), jnp.float32, -lim1, lim1)
    b_proj = jax.random.uniform(k_b1, (PROJ_DIM,), jnp.float32, -lim1, lim1)
    lim2 = 1.0 / math.sqrt(PROJ_DIM)
    w_fc = jax.random.uniform(k_w2, (PROJ_DIM, PROJ_DIM), jnp.float32, -lim2, lim2)
    b_fc = jax.random.uniform(k_b2, (PROJ_DIM,), jnp.float32, -lim2, lim2)
    gamma = jnp.ones((PROJ_DIM,), jnp.float32)
    beta = jnp.zeros((PROJ_DIM,), jnp.float32)

    out = jax.jit(projection_head)(x, w_proj, b_proj, w_fc, b_fc, gamma, beta)
    out = jax.block_until_ready(out)

    ref = projection_head_ref(x, w_proj, b_proj, w_fc, b_fc, gamma, beta)

    assert out.shape == (B, PROJ_DIM) and out.dtype == jnp.float32
    assert bool(jnp.all(jnp.isfinite(out)))
    assert bool(jnp.allclose(out, ref, atol=1e-2, rtol=1e-2))
    print("KERNEL_OK")
</pallas_src>

<mosaic_0001>
module attributes {stable_mosaic.version = 11 : i64} {
  func.func @projection_head_kernel(%arg0: i32, %arg1: memref<8x32xf32, #tpu.memory_space<vmem>>, %arg2: memref<32x256xbf16, #tpu.memory_space<vmem>>, %arg3: memref<256x256xbf16, #tpu.memory_space<vmem>>, %arg4: memref<4x256xf32, #tpu.memory_space<vmem>>, %arg5: memref<8x256xf32, #tpu.memory_space<vmem>>) attributes {dimension_semantics = [#tpu.dimension_semantics<parallel>], iteration_bounds = array<i64: 2>, scalar_prefetch = 0 : i64, scratch_operands = 0 : i64, tpu.core_type = #tpu.core_type<tc>, window_params = [{transform_indices = @transform_0, window_bounds = array<i64: 8, 32>}, {pipeline_mode = #tpu.pipeline_mode<synchronous>, transform_indices = @transform_1, window_bounds = array<i64: 32, 256>}, {pipeline_mode = #tpu.pipeline_mode<synchronous>, transform_indices = @transform_2, window_bounds = array<i64: 256, 256>}, {pipeline_mode = #tpu.pipeline_mode<synchronous>, transform_indices = @transform_3, window_bounds = array<i64: 4, 256>}, {transform_indices = @transform_4, window_bounds = array<i64: 8, 256>}]} {
    %c0 = arith.constant 0 : index
    %c0_0 = arith.constant 0 : index
    %0 = vector.load %arg4[%c0, %c0_0] : memref<4x256xf32, #tpu.memory_space<vmem>>, vector<1x256xf32>
    %c1 = arith.constant 1 : index
    %c0_1 = arith.constant 0 : index
    %1 = vector.load %arg4[%c1, %c0_1] : memref<4x256xf32, #tpu.memory_space<vmem>>, vector<1x256xf32>
    %c2 = arith.constant 2 : index
    %c0_2 = arith.constant 0 : index
    %2 = vector.load %arg4[%c2, %c0_2] : memref<4x256xf32, #tpu.memory_space<vmem>>, vector<1x256xf32>
    %c3 = arith.constant 3 : index
    %c0_3 = arith.constant 0 : index
    %3 = vector.load %arg4[%c3, %c0_3] : memref<4x256xf32, #tpu.memory_space<vmem>>, vector<1x256xf32>
    %c0_4 = arith.constant 0 : index
    %c0_5 = arith.constant 0 : index
    %4 = vector.load %arg1[%c0_4, %c0_5] : memref<8x32xf32, #tpu.memory_space<vmem>>, vector<8x32xf32>
    %5 = arith.truncf %4 : vector<8x32xf32> to vector<8x32xbf16>
    %c0_6 = arith.constant 0 : index
    %c0_7 = arith.constant 0 : index
    %6 = vector.load %arg2[%c0_6, %c0_7] : memref<32x256xbf16, #tpu.memory_space<vmem>>, vector<32x256xbf16>
    %cst = arith.constant dense<0.000000e+00> : vector<8x256xf32>
    %7 = tpu.matmul %5, %6, %cst {dimension_numbers = #tpu.dot_dimension_numbers<[1], [0], [0], [1], [0, 0, 1, 1], [], []>} : vector<8x32xbf16>, vector<32x256xbf16>, vector<8x256xf32> -> vector<8x256xf32>
    %8 = vector.broadcast %0 : vector<1x256xf32> to vector<8x256xf32>
    %9 = arith.addf %7, %8 : vector<8x256xf32>
    %10 = arith.mulf %9, %9 : vector<8x256xf32>
    %11 = arith.mulf %9, %10 : vector<8x256xf32>
    %cst_8 = arith.constant 4.471500e-02 : f32
    %12 = vector.broadcast %cst_8 : f32 to vector<8x256xf32>
    %13 = arith.mulf %12, %11 : vector<8x256xf32>
    %14 = arith.addf %9, %13 : vector<8x256xf32>
    %cst_9 = arith.constant 0.797884583 : f32
    %15 = vector.broadcast %cst_9 : f32 to vector<8x256xf32>
    %16 = arith.mulf %15, %14 : vector<8x256xf32>
    %17 = math.tanh %16 : vector<8x256xf32>
    %cst_10 = arith.constant 1.000000e+00 : f32
    %18 = vector.broadcast %cst_10 : f32 to vector<8x256xf32>
    %19 = arith.addf %18, %17 : vector<8x256xf32>
    %cst_11 = arith.constant 5.000000e-01 : f32
    %20 = vector.broadcast %cst_11 : f32 to vector<8x256xf32>
    %21 = arith.mulf %20, %19 : vector<8x256xf32>
    %22 = arith.mulf %9, %21 : vector<8x256xf32>
    %23 = arith.truncf %22 : vector<8x256xf32> to vector<8x256xbf16>
    %c0_12 = arith.constant 0 : index
    %c0_13 = arith.constant 0 : index
    %24 = vector.load %arg3[%c0_12, %c0_13] : memref<256x256xbf16, #tpu.memory_space<vmem>>, vector<256x256xbf16>
    %cst_14 = arith.constant dense<0.000000e+00> : vector<8x256xf32>
    %25 = tpu.matmul %23, %24, %cst_14 {dimension_numbers = #tpu.dot_dimension_numbers<[1], [0], [0], [1], [0, 0, 1, 1], [], []>} : vector<8x256xbf16>, vector<256x256xbf16>, vector<8x256xf32> -> vector<8x256xf32>
    %26 = vector.broadcast %1 : vector<1x256xf32> to vector<8x256xf32>
    %27 = arith.addf %25, %26 : vector<8x256xf32>
    %28 = arith.addf %27, %9 : vector<8x256xf32>
    %cst_15 = arith.constant dense<0.000000e+00> : vector<8xf32>
    %29 = vector.multi_reduction <add>, %28, %cst_15 [1] : vector<8x256xf32> to vector<8xf32>
    %30 = vector.shape_cast %29 : vector<8xf32> to vector<8x1xf32>
    %31 = arith.mulf %28, %28 : vector<8x256xf32>
    %cst_16 = arith.constant dense<0.000000e+00> : vector<8xf32>
    %32 = vector.multi_reduction <add>, %31, %cst_16 [1] : vector<8x256xf32> to vector<8xf32>
    %33 = vector.shape_cast %32 : vector<8xf32> to vector<8x1xf32>
    %cst_17 = arith.constant 3.906250e-03 : f32
    %34 = vector.broadcast %cst_17 : f32 to vector<8x1xf32>
    %35 = arith.mulf %30, %34 : vector<8x1xf32>
    %cst_18 = arith.constant 3.906250e-03 : f32
    %36 = vector.broadcast %cst_18 : f32 to vector<8x1xf32>
    %37 = arith.mulf %33, %36 : vector<8x1xf32>
    %38 = arith.mulf %35, %35 : vector<8x1xf32>
    %39 = arith.subf %37, %38 : vector<8x1xf32>
    %cst_19 = arith.constant 0.000000e+00 : f32
    %40 = vector.broadcast %cst_19 : f32 to vector<8x1xf32>
    %41 = arith.maximumf %39, %40 : vector<8x1xf32>
    %42 = vector.broadcast %35 : vector<8x1xf32> to vector<8x256xf32>
    %43 = arith.subf %28, %42 : vector<8x256xf32>
    %cst_20 = arith.constant 9.99999974E-6 : f32
    %44 = vector.broadcast %cst_20 : f32 to vector<8x1xf32>
    %45 = arith.addf %41, %44 : vector<8x1xf32>
    %46 = math.rsqrt %45 : vector<8x1xf32>
    %47 = vector.broadcast %46 : vector<8x1xf32> to vector<8x256xf32>
    %48 = arith.mulf %43, %47 : vector<8x256xf32>
    %49 = vector.broadcast %2 : vector<1x256xf32> to vector<8x256xf32>
    %50 = arith.mulf %48, %49 : vector<8x256xf32>
    %51 = vector.broadcast %3 : vector<1x256xf32> to vector<8x256xf32>
    %52 = arith.addf %50, %51 : vector<8x256xf32>
    %c0_21 = arith.constant 0 : index
    %c0_22 = arith.constant 0 : index
    %53 = vector.load %arg5[%c0_21, %c0_22] : memref<8x256xf32, #tpu.memory_space<vmem>>, vector<8x256xf32>
    tpu.vector_store %arg5[%c0_21, %c0_22], %52 {strides = array<i32>} : memref<8x256xf32, #tpu.memory_space<vmem>>, vector<8x256xf32>,
    return
  }
  func.func @transform_0(%arg0: i32) -> (i32, i32) {
    %c0_i32 = arith.constant 0 : i32
    %c0_i32_0 = arith.constant 0 : i32
    return %arg0, %c0_i32 : i32, i32
  }
  func.func @transform_1(%arg0: i32) -> (i32, i32) {
    %c0_i32 = arith.constant 0 : i32
    %c0_i32_0 = arith.constant 0 : i32
    %c0_i32_1 = arith.constant 0 : i32
    return %c0_i32, %c0_i32_0 : i32, i32
  }
  func.func @transform_2(%arg0: i32) -> (i32, i32) {
    %c0_i32 = arith.constant 0 : i32
    %c0_i32_0 = arith.constant 0 : i32
    %c0_i32_1 = arith.constant 0 : i32
    return %c0_i32, %c0_i32_0 : i32, i32
  }
  func.func @transform_3(%arg0: i32) -> (i32, i32) {
    %c0_i32 = arith.constant 0 : i32
    %c0_i32_0 = arith.constant 0 : i32
    %c0_i32_1 = arith.constant 0 : i32
    return %c0_i32, %c0_i32_0 : i32, i32
  }
  func.func @transform_4(%arg0: i32) -> (i32, i32) {
    %c0_i32 = arith.constant 0 : i32
    %c0_i32_0 = arith.constant 0 : i32
    return %arg0, %c0_i32 : i32, i32
  }
}

</mosaic_0001>

<llo_original>
// kernel: projection_head.1
$region0: #{projection_head.1}
  #allocation0 [shape = 'u32[]', space=smem, size = 0x4, offset = 0x4, fixed_abs, tag = 'smem constant byte address 0x4 - core index']
  #allocation1 [shape = 'u32[144,128]{1,0:T(1,128)}', space=vmem, size = 0x12000, scoped, tag = 'internal scratch']
  %s0 = inlined_call_operand.hbm [shape: f32[16,32], index: 0, kind: input, shape index: {}]
  %s1 = inlined_call_operand.hbm [shape: bf16[32,256], index: 1, kind: input, shape index: {}]
  %s2 = inlined_call_operand.hbm [shape: bf16[256,256], index: 2, kind: input, shape index: {}]
  %s3 = inlined_call_operand.hbm [shape: f32[4,256], index: 3, kind: input, shape index: {}]
  %s4 = inlined_call_operand.hbm [shape: f32[16,256], index: 4, kind: output, shape index: {}]
  %s5 = sld [smem:[#allocation0]]
  $region65: #{projection_head.1} parent=0
    _
  %s7 = ssub.s32 1, %s5
  %s8 = scalar_select 0, %s7, %s5
  $region1: #{projection_head.1} parent=0
    #allocation2 [shape = 'u8[8192]{0}', space=vmem, size = 0x2000, scoped, tag = 'input window, operand 0']
    #allocation3 [shape = 's32[2]{0}', space=sflag, size = 0x8, scoped, tag = 'scoped memory for projection_head.1']
    #allocation4 [shape = 's32[2]{0}', space=sflag, size = 0x8, scoped, tag = 'scoped memory for projection_head.1']
    #allocation5 [shape = 'u8[16384]{0}', space=vmem, size = 0x4000, scoped, tag = 'input window, operand 1, single buffered']
    #allocation6 [shape = 's32[1]{0}', space=sflag, size = 0x4, scoped, tag = 'scoped memory for projection_head.1']
    #allocation7 [shape = 'u8[131072]{0}', space=vmem, size = 0x20000, scoped, tag = 'input window, operand 2, single buffered']
    #allocation8 [shape = 'u8[4096]{0}', space=vmem, size = 0x1000, scoped, tag = 'input window, operand 3, single buffered']
    #allocation9 [shape = 's32[1]{0}', space=sflag, size = 0x4, scoped, tag = 'scoped memory for projection_head.1']
    #allocation10 [shape = 'u8[16384]{0}', space=vmem, size = 0x4000, scoped, tag = 'output window, operand 0']
    %9 = vsyncpa [#allocation3], 0
    %s10 = scalar_lea.sflag [#allocation3], 1
    %11 = vsyncpa %s10, 0
    %12 = vsyncpa [#allocation6], 0
    %13 = vsyncpa [#allocation9], 0
    %14 = vsyncpa [#allocation4], 0
    %s15 = scalar_lea.sflag [#allocation4], 1
    %16 = vsyncpa %s15, 0
    loop: start=0, step=1, limit=4
    $region2: #{projection_head.1} parent=1 // loop_pre_header
      _
    $region3: #{projection_head.1} parent=1 // loop_header
      %s18 = sphi 0, %s22
      %p19 = scmp.ge.s32.totalorder %s18, 4
      %s28 = sphi 0, %s30
      %s31 = sphi 0, %s28
      %s32 = sphi 0, %s31
      %s48 = sphi 0, %s32
      %s52 = sphi 0, %s52
      %s54 = sphi 0, %s52
      %s55 = sphi 0, %s54
      %s69 = sphi 0, %s55
      %s73 = sphi 0, %s73
      %s75 = sphi 0, %s73
      %s76 = sphi 0, %s75
      %s90 = sphi 0, %s76
      %s94 = sphi 0, %s94
      %s96 = sphi 0, %s94
      %s97 = sphi 0, %s96
      %s111 = sphi 0, %s97
      %s117 = sphi 0, %s119
      %s120 = sphi 0, %s117
      %s121 = sphi 0, %s120
      %s137 = sphi 0, %s121
    $region4: #{projection_head.1} parent=1 // loop_header_branch
      %21 = sbr.rel (%p19) target = $region8
    $region5: #{projection_head.1} parent=1 // loop_body
      %s23 = ssub.s32 %s18, 1
      %s24 = ssub.s32 %s18, 2
      %s25 = sadd.s32 %s18, 1
      %s26 = ssub.s32 %s18, %s25
      %p27 = scmp.eq.s32.totalorder %s26, 0
      %s29 = sadd.s32 %s28, 1
      %s30 = scalar_select %p27, %s28, %s29
      %p33 = pneg %p27
      %p34 = scmp.eq.s32.totalorder %s18, 1
      %p35 = por %p33, %p34
      %p36 = scmp.ne.s32.totalorder %s28, %s31
      %p37 = scmp.eq.s32.totalorder %s18, 0
      %p38 = por %p36, %p37
      %p39 = scmp.ne.s32.totalorder %s28, %s31
      %p40 = scmp.eq.s32.totalorder %s23, 1
      %p41 = por %p39, %p40
      %p42 = scmp.ne.s32.totalorder %s31, %s32
      %p43 = scmp.eq.s32.totalorder %s23, 0
      %p44 = por %p42, %p43
      %p45 = scmp.ne.s32.totalorder %s31, %s32
      %p46 = scmp.eq.s32.totalorder %s24, 1
      %p47 = por %p45, %p46
      %p49 = scmp.ne.s32.totalorder %s32, %s48
      %p50 = scmp.eq.s32.totalorder %s24, 0
      %p51 = por %p49, %p50
      %s53 = sadd.s32 %s52, 1
      %p56 = scmp.eq.s32.totalorder %s18, 1
      %p57 = scmp.ne.s32.totalorder %s52, %s54
      %p58 = scmp.eq.s32.totalorder %s18, 0
      %p59 = por %p57, %p58
      %p60 = scmp.ne.s32.totalorder %s52, %s54
      %p61 = scmp.eq.s32.totalorder %s23, 1
      %p62 = por %p60, %p61
      %p63 = scmp.ne.s32.totalorder %s54, %s55
      %p64 = scmp.eq.s32.totalorder %s23, 0
      %p65 = por %p63, %p64
      %p66 = scmp.ne.s32.totalorder %s54, %s55
      %p67 = scmp.eq.s32.totalorder %s24, 1
      %p68 = por %p66, %p67
      %p70 = scmp.ne.s32.totalorder %s55, %s69
      %p71 = scmp.eq.s32.totalorder %s24, 0
      %p72 = por %p70, %p71
      %s74 = sadd.s32 %s73, 1
      %p77 = scmp.eq.s32.totalorder %s18, 1
      %p78 = scmp.ne.s32.totalorder %s73, %s75
      %p79 = scmp.eq.s32.totalorder %s18, 0
      %p80 = por %p78, %p79
      %p81 = scmp.ne.s32.totalorder %s73, %s75
      %p82 = scmp.eq.s32.totalorder %s23, 1
      %p83 = por %p81, %p82
      %p84 = scmp.ne.s32.totalorder %s75, %s76
      %p85 = scmp.eq.s32.totalorder %s23, 0
      %p86 = por %p84, %p85
      %p87 = scmp.ne.s32.totalorder %s75, %s76
      %p88 = scmp.eq.s32.totalorder %s24, 1
      %p89 = por %p87, %p88
      %p91 = scmp.ne.s32.totalorder %s76, %s90
      %p92 = scmp.eq.s32.totalorder %s24, 0
      %p93 = por %p91, %p92
      %s95 = sadd.s32 %s94, 1
      %p98 = scmp.eq.s32.totalorder %s18, 1
      %p99 = scmp.ne.s32.totalorder %s94, %s96
      %p100 = scmp.eq.s32.totalorder %s18, 0
      %p101 = por %p99, %p100
      %p102 = scmp.ne.s32.totalorder %s94, %s96
      %p103 = scmp.eq.s32.totalorder %s23, 1
      %p104 = por %p102, %p103
      %p105 = scmp.ne.s32.totalorder %s96, %s97
      %p106 = scmp.eq.s32.totalorder %s23, 0
      %p107 = por %p105, %p106
      %p108 = scmp.ne.s32.totalorder %s96, %s97
      %p109 = scmp.eq.s32.totalorder %s24, 1
      %p110 = por %p108, %p109
      %p112 = scmp.ne.s32.totalorder %s97, %s111
      %p113 = scmp.eq.s32.totalorder %s24, 0
      %p114 = por %p112, %p113
      %s115 = ssub.s32 %s18, %s25
      %p116 = scmp.eq.s32.totalorder %s115, 0
      %s118 = sadd.s32 %s117, 1
      %s119 = scalar_select %p116, %s117, %s118
      %p122 = pneg %p116
      %p123 = scmp.eq.s32.totalorder %s18, 1
      %p124 = por %p122, %p123
      %p125 = scmp.ne.s32.totalorder %s117, %s120
      %p126 = scmp.eq.s32.totalorder %s18, 0
      %p127 = por %p125, %p126
      %p128 = scmp.ne.s32.totalorder %s117, %s120
      %p129 = scmp.eq.s32.totalorder %s23, 1
      %p130 = por %p128, %p129
      %p131 = scmp.ne.s32.totalorder %s120, %s121
      %p132 = scmp.eq.s32.totalorder %s23, 0
      %p133 = por %p131, %p132
      %p134 = scmp.ne.s32.totalorder %s120, %s121
      %p135 = scmp.eq.s32.totalorder %s24, 1
      %p136 = por %p134, %p135
      %p138 = scmp.ne.s32.totalorder %s121, %s137
      %p139 = scmp.eq.s32.totalorder %s24, 0
      %p140 = por %p138, %p139
      %p141 = scmp.le.s32.totalorder 1, %s18
      %p142 = scmp.lt.s32.totalorder %s18, 3
      %p143 = pnand %p141, %p142
      %p144 = pneg %p143
      // Predicated region
      $region9: #{projection_head.1} parent=5 // pred_check
        _
      $region10: #{projection_head.1} parent=5 // pred_check_branch
        %146 = sbr.rel (%p143) target = $region12
      $region11: #{projection_head.1} parent=5 // pred_region
        %s147 = ssub.s32 %s18, 1
        // Predicated region
        $region13: #{projection_head.1} parent=11 // pred_check
          %p148 = pneg %p65
        $region14: #{projection_head.1} parent=11 // pred_check_branch
          %150 = sbr.rel (%p148) target = $region16
        $region15: #{projection_head.1} parent=11 // pred_region
          %s152 = ssub.s32 512, 512
          %153 = vsyncadd [#allocation6], %s152
          %s154 = sshll.u32 [#allocation5], 4
          %s155 = int_to_ptr.vmem [resolvable:$true] %s154
          %160 = dma.hbm_to_vmem [thread:$0]  %s1, 512, %s155, [#allocation6], 128, 128, 8
        $region16: #{projection_head.1} parent=11 // pred_fallthru
          _
        // Predicated region
        $region17: #{projection_head.1} parent=11 // pred_check
          %p161 = pneg %p86
        $region18: #{projection_head.1} parent=11 // pred_check_branch
          %163 = sbr.rel (%p161) target = $region20
        $region19: #{projection_head.1} parent=11 // pred_region
          %s165 = ssub.s32 4096, 4096
          %166 = vsyncadd [#allocation6], %s165
          %s167 = sshll.u32 [#allocation7], 4
          %s168 = int_to_ptr.vmem [resolvable:$true] %s167
          %173 = dma.hbm_to_vmem [thread:$0]  %s2, 4096, %s168, [#allocation6], 128, 128, 8
        $region20: #{projection_head.1} parent=11 // pred_fallthru
          _
        // Predicated region
        $region21: #{projection_head.1} parent=11 // pred_check
          %p174 = pneg %p107
        $region22: #{projection_head.1} parent=11 // pred_check_branch
          %176 = sbr.rel (%p174) target = $region24
        $region23: #{projection_head.1} parent=11 // pred_region
          %s178 = ssub.s32 128, 128
          %179 = vsyncadd [#allocation9], %s178
          %s181 = sshll.u32 [#allocation8], 4
          %s182 = int_to_ptr.vmem [resolvable:$true] %s181
          %184 = dma.hbm_to_vmem [thread:$0]  %s3, 128, %s182, [#allocation9]
        $region24: #{projection_head.1} parent=11 // pred_fallthru
          _
      $region12: #{projection_head.1} parent=5 // pred_fallthru
        _
      %p185 = scmp.lt.s32.totalorder %s18, 2
      // Predicated region
      $region25: #{projection_head.1} parent=5 // pred_check
        %p186 = pneg %p185
      $region26: #{projection_head.1} parent=5 // pred_check_branch
        %188 = sbr.rel (%p186) target = $region28
      $region27: #{projection_head.1} parent=5 // pred_region
        // Predicated region
        $region29: #{projection_head.1} parent=27 // pred_check
          %p189 = pneg %p38
        $region30: #{projection_head.1} parent=27 // pred_check_branch
          %191 = sbr.rel (%p189) target = $region32
        $region31: #{projection_head.1} parent=27 // pred_region
          %s192 = sand.u32 %s28, 1
          %s193 = scalar_lea.sflag [#allocation3], %s192
          %s194 = sand.u32 %s28, 1
          %s195 = smul.addr %s194, 8
          %s196 = scalar_lea.vmem [#allocation2], %s195
          %s198 = ssub.s32 128, 128
          %199 = vsyncadd %s193, %s198
          %s200 = smul.addr %s18, 128
          %s201 = scalar_lea.hbm %s0, %s200
          %s203 = sshll.u32 %s196, 4
          %s204 = int_to_ptr.vmem [resolvable:$true] %s203
          %206 = dma.hbm_to_vmem [thread:$0]  %s201, 128, %s204, %s193
        $region32: #{projection_head.1} parent=27 // pred_fallthru
          _
      $region28: #{projection_head.1} parent=5 // pred_fallthru
        _
      %p207 = scmp.le.s32.totalorder 1, %s18
      %p208 = scmp.lt.s32.totalorder %s18, 3
      %p209 = pnand %p207, %p208
      %p210 = pneg %p209
      // Predicated region
      $region33: #{projection_head.1} parent=5 // pred_check
        _
      $region34: #{projection_head.1} parent=5 // pred_check_branch
        %212 = sbr.rel (%p209) target = $region36
      $region35: #{projection_head.1} parent=5 // pred_region
        %s213 = ssub.s32 %s18, 1
        %s214 = sand.u32 %s31, 1
        %s215 = scalar_lea.sflag [#allocation3], %s214
        %s216 = sand.u32 %s31, 1
        %s217 = smul.addr %s216, 8
        %s218 = scalar_lea.vmem [#allocation2], %s217
        // Predicated region
        $region37: #{projection_head.1} parent=35 // pred_check
          %p219 = pneg %p44
        $region38: #{projection_head.1} parent=35 // pred_check_branch
          %221 = sbr.rel (%p219) target = $region40
        $region39: #{projection_head.1} parent=35 // pred_region
          %222 = dma.done %s215, 128
        $region40: #{projection_head.1} parent=35 // pred_fallthru
          _
        // Predicated region
        $region41: #{projection_head.1} parent=35 // pred_check
          %p223 = pneg %p65
        $region42: #{projection_head.1} parent=35 // pred_check_branch
          %225 = sbr.rel (%p223) target = $region44
        $region43: #{projection_head.1} parent=35 // pred_region
          %226 = dma.done [#allocation6], 512
        $region44: #{projection_head.1} parent=35 // pred_fallthru
          _
        // Predicated region
        $region45: #{projection_head.1} parent=35 // pred_check
          %p227 = pneg %p86
        $region46: #{projection_head.1} parent=35 // pred_check_branch
          %229 = sbr.rel (%p227) target = $region48
        $region47: #{projection_head.1} parent=35 // pred_region
          %230 = dma.done [#allocation6], 4096
        $region48: #{projection_head.1} parent=35 // pred_fallthru
          _
        // Predicated region
        $region49: #{projection_head.1} parent=35 // pred_check
          %p231 = pneg %p107
        $region50: #{projection_head.1} parent=35 // pred_check_branch
          %233 = sbr.rel (%p231) target = $region52
        $region51: #{projection_head.1} parent=35 // pred_region
          %234 = dma.done [#allocation9], 128
        $region52: #{projection_head.1} parent=35 // pred_fallthru
          _
        %s235 = sand.u32 %s31, 1
        %s236 = scalar_lea.sflag [#allocation3], %s235
        %s237 = sand.u32 %s31, 1
        %s238 = smul.addr %s237, 8
        %s239 = scalar_lea.vmem [#allocation2], %s238
        %p240 = pneg %p44
        %p241 = pneg %p41
        %p242 = pneg %p65
        %p243 = pneg %p62
        %p244 = pneg %p86
        %p245 = pneg %p83
        %p246 = pneg %p107
        %p247 = pneg %p104
        %p248 = pneg %p133
        %p249 = pneg %p130
        %s250 = sand.u32 %s120, 1
        %s251 = scalar_lea.sflag [#allocation4], %s250
        %s252 = sand.u32 %s120, 1
        %s253 = smul.addr %s252, 16
        %s254 = scalar_lea.vmem [#allocation10], %s253
        %v256 = vld [vmem:[#allocation8] ss:$4 sm:$0x3]
        %s257 = scalar_lea.vmem [#allocation8], 1
        %v258 = vld [vmem:[%s257] ss:$4 sm:$0x3]
        %s259 = scalar_lea.vmem [#allocation8], 2
        %v260 = vld [vmem:[%s259] ss:$4 sm:$0x3]
        %s261 = scalar_lea.vmem [#allocation8], 3
        %v262 = vld [vmem:[%s261] ss:$4 sm:$0x3]
        %v263 = vld [vmem:[%s218] sm:$0xff]
        %v264 = vpack.c.bf16 %v263, %v263
        %v265 = vld [vmem:[#allocation5] sm:$0xff]
        %v266 = vld [vmem:[#allocation5 + $0x8] sm:$0xff]
        %v267 = vld [vmem:[#allocation5 + $0x10] sm:$0xff]
        %v268 = vld [vmem:[#allocation5 + $0x18] sm:$0xff]
        %v270 = vlaneseq
        %v271 = vshrl.u32 %v270, 7
        %v272 = vsub.s32 0, %v271
        %v273 = vrot.slane %v256, %v272
        %v274 = vlaneseq
        %v275 = vshrl.u32 %v274, 7
        %v276 = vsub.s32 1, %v275
        %v277 = vrot.slane %v256, %v276
        %v284 = vunpack.c.l.b16 %v265
        %v285 = vunpack.c.h.b16 %v265
        %v286 = vunpack.c.l.b16 %v266
        %v287 = vunpack.c.h.b16 %v266
        %v288 = vunpack.c.l.b16 %v267
        %v289 = vunpack.c.h.b16 %v267
        %v290 = vunpack.c.l.b16 %v268
        %v291 = vunpack.c.h.b16 %v268
        %v292 = vpack.c.b16 %v286, %v284
        %v293 = vpack.c.b16 %v287, %v285
        %v294 = vpack.c.b16 %v290, %v288
        %v295 = vpack.c.b16 %v291, %v289
        %vm300 = vcmask 261120
        %v302 = vsel %vm300, %v264, 0
        %304 = vmatprep.subr.bf16.mxu0 %v293
        %305 = vmatpush1.bf16.msra.mxu0 %v292
        %306 = vmatprep.subr.bf16.mxu0 %v295
        %307 = vmatpush1.bf16.msra.mxu0 %v294
        %308 = vmatprep.subr.bf16.mxu0 0
        %309 = vmatpush1.bf16.msra.mxu0 0
        %310 = vmatprep.subr.bf16.mxu0 0
        %311 = vmatpush1.bf16.msra.mxu0 0
        %312 = vmatprep.subr.bf16.mxu0 0
        %313 = vmatpush1.bf16.msra.mxu0 0
        %314 = vmatprep.subr.bf16.mxu0 0
        %315 = vmatpush1.bf16.msra.mxu0 0
        %316 = vmatprep.subr.bf16.mxu0 0
        %317 = vmatpush1.bf16.msra.mxu0 0
        %318 = vmatprep.subr.bf16.mxu0 0
        %319 = vmatpush1.bf16.msra.mxu0 0
        %320 = vmatprep.subr.bf16.mxu0 0
        %321 = vmatpush1.bf16.msra.mxu0 0
        %322 = vmatprep.subr.bf16.mxu0 0
        %323 = vmatpush1.bf16.msra.mxu0 0
        %324 = vmatprep.subr.bf16.mxu0 0
        %325 = vmatpush1.bf16.msra.mxu0 0
        %326 = vmatprep.subr.bf16.mxu0 0
        %327 = vmatpush1.bf16.msra.mxu0 0
        %328 = vmatprep.subr.bf16.mxu0 0
        %329 = vmatpush1.bf16.msra.mxu0 0
        %330 = vmatprep.subr.bf16.mxu0 0
        %331 = vmatpush1.bf16.msra.mxu0 0
        %332 = vmatprep.subr.bf16.mxu0 0
        %333 = vmatpush1.bf16.msra.mxu0 0
        %334 = vmatprep.subr.bf16.mxu0 0
        %335 = vmatpush1.bf16.msra.mxu0 0
        %336 = vmatprep.mubr.bf16.mxu0 0
        %337 = vmatmul.mubr.bf16.gmra.mrb[0].mxu0 %v302
        %v338 = vpop.f32.mrb[0].mxu0
        %v339 = vadd.f32 %v273, %v338
        %v340 = vpop.f32.mrb[0].mxu0
        %v341 = vadd.f32 %v277, %v340
        %v342 = vpop.f32.mrb[0].mxu0
        %v343 = vpop.f32.mrb[0].mxu0
        %344 = vdwg.mxu0
        %v345 = vmul.f32 %v339, %v339
        %v346 = vmul.f32 %v341, %v341
        %v347 = vmul.f32 %v339, %v345
        %v348 = vmul.f32 %v341, %v346
        %v349 = vmul.f32 %v347, 0.044715
        %v350 = vmul.f32 %v348, 0.044715
        %v351 = vadd.f32 %v339, %v349
        %v352 = vadd.f32 %v341, %v350
        %v353 = vmul.f32 %v351, 0.7978846
        %v354 = vmul.f32 %v352, 0.7978846
        %v355 = vtanh.pop %v353
        %v356 = vtanh.pop %v354
        %v357 = vadd.f32 %v355, 1.0
        %v358 = vadd.f32 %v356, 1.0
        %v359 = vmul.f32 %v357, 0.5
        %v360 = vmul.f32 %v358, 0.5
        %v361 = vmul.f32 %v339, %v359
        %v362 = vmul.f32 %v341, %v360
        %v363 = vpack.c.bf16 %v361, %v361
        %v364 = vpack.c.bf16 %v362, %v362
        %v365 = vld [vmem:[#allocation7] sm:$0xff]
        %v366 = vld [vmem:[#allocation7 + $0x8] sm:$0xff]
        %v367 = vld [vmem:[#allocation7 + $0x10] sm:$0xff]
        %v368 = vld [vmem:[#allocation7 + $0x18] sm:$0xff]
        %v369 = vld [vmem:[#allocation7 + $0x20] sm:$0xff]
        %v370 = vld [vmem:[#allocation7 + $0x28] sm:$0xff]
        %v371 = vld [vmem:[#allocation7 + $0x30] sm:$0xff]
        %v372 = vld [vmem:[#allocation7 + $0x38] sm:$0xff]
        %v373 = vld [vmem:[#allocation7 + $0x40] sm:$0xff]
        %v374 = vld [vmem:[#allocation7 + $0x48] sm:$0xff]
        %v375 = vld [vmem:[#allocation7 + $0x50] sm:$0xff]
        %v376 = vld [vmem:[#allocation7 + $0x58] sm:$0xff]
        %v377 = vld [vmem:[#allocation7 + $0x60] sm:$0xff]
        %v378 = vld [vmem:[#allocation7 + $0x68] sm:$0xff]
        %v379 = vld [vmem:[#allocation7 + $0x70] sm:$0xff]
        %v380 = vld [vmem:[#allocation7 + $0x78] sm:$0xff]
        %v381 = vld [vmem:[#allocation7 + $0x80] sm:$0xff]
        %v382 = vld [vmem:[#allocation7 + $0x88] sm:$0xff]
        %v383 = vld [vmem:[#allocation7 + $0x90] sm:$0xff]
        %v384 = vld [vmem:[#allocation7 + $0x98] sm:$0xff]
        %v385 = vld [vmem:[#allocation7 + $0xa0] sm:$0xff]
        %v386 = vld [vmem:[#allocation7 + $0xa8] sm:$0xff]
        %v387 = vld [vmem:[#allocation7 + $0xb0] sm:$0xff]
        %v388 = vld [vmem:[#allocation7 + $0xb8] sm:$0xff]
        %v389 = vld [vmem:[#allocation7 + $0xc0] sm:$0xff]
        %v390 = vld [vmem:[#allocation7 + $0xc8] sm:$0xff]
        %v391 = vld [vmem:[#allocation7 + $0xd0] sm:$0xff]
        %v392 = vld [vmem:[#allocation7 + $0xd8] sm:$0xff]
        %v393 = vld [vmem:[#allocation7 + $0xe0] sm:$0xff]
        %v394 = vld [vmem:[#allocation7 + $0xe8] sm:$0xff]
        %v395 = vld [vmem:[#allocation7 + $0xf0] sm:$0xff]
        %v396 = vld [vmem:[#allocation7 + $0xf8] sm:$0xff]
        %v398 = vlaneseq
        %v399 = vshrl.u32 %v398, 7
        %v400 = vsub.s32 0, %v399
        %v401 = vrot.slane %v258, %v400
        %v402 = vlaneseq
        %v403 = vshrl.u32 %v402, 7
        %v404 = vsub.s32 1, %v403
        %v405 = vrot.slane %v258, %v404
        %v440 = vunpack.c.l.b16 %v365
        %v441 = vunpack.c.h.b16 %v365
        %v442 = vunpack.c.l.b16 %v366
        %v443 = vunpack.c.h.b16 %v366
        %v444 = vunpack.c.l.b16 %v367
        %v445 = vunpack.c.h.b16 %v367
        %v446 = vunpack.c.l.b16 %v368
        %v447 = vunpack.c.h.b16 %v368
        %v448 = vunpack.c.l.b16 %v369
        %v449 = vunpack.c.h.b16 %v369
        %v450 = vunpack.c.l.b16 %v370
        %v451 = vunpack.c.h.b16 %v370
        %v452 = vunpack.c.l.b16 %v371
        %v453 = vunpack.c.h.b16 %v371
        %v454 = vunpack.c.l.b16 %v372
        %v455 = vunpack.c.h.b16 %v372
        %v456 = vunpack.c.l.b16 %v373
        %v457 = vunpack.c.h.b16 %v373
        %v458 = vunpack.c.l.b16 %v374
        %v459 = vunpack.c.h.b16 %v374
        %v460 = vunpack.c.l.b16 %v375
        %v461 = vunpack.c.h.b16 %v375
        %v462 = vunpack.c.l.b16 %v376
        %v463 = vunpack.c.h.b16 %v376
        %v464 = vunpack.c.l.b16 %v377
        %v465 = vunpack.c.h.b16 %v377
        %v466 = vunpack.c.l.b16 %v378
        %v467 = vunpack.c.h.b16 %v378
        %v468 = vunpack.c.l.b16 %v379
        %v469 = vunpack.c.h.b16 %v379
        %v470 = vunpack.c.l.b16 %v380
        %v471 = vunpack.c.h.b16 %v380
        %v472 = vunpack.c.l.b16 %v381
        %v473 = vunpack.c.h.b16 %v381
        %v474 = vunpack.c.l.b16 %v382
        %v475 = vunpack.c.h.b16 %v382
        %v476 = vunpack.c.l.b16 %v383
        %v477 = vunpack.c.h.b16 %v383
        %v478 = vunpack.c.l.b16 %v384
        %v479 = vunpack.c.h.b16 %v384
        %v480 = vunpack.c.l.b16 %v385
        %v481 = vunpack.c.h.b16 %v385
        %v482 = vunpack.c.l.b16 %v386
        %v483 = vunpack.c.h.b16 %v386
        %v484 = vunpack.c.l.b16 %v387
        %v485 = vunpack.c.h.b16 %v387
        %v486 = vunpack.c.l.b16 %v388
        %v487 = vunpack.c.h.b16 %v388
        %v488 = vunpack.c.l.b16 %v389
        %v489 = vunpack.c.h.b16 %v389
        %v490 = vunpack.c.l.b16 %v390
        %v491 = vunpack.c.h.b16 %v390
        %v492 = vunpack.c.l.b16 %v391
        %v493 = vunpack.c.h.b16 %v391
        %v494 = vunpack.c.l.b16 %v392
        %v495 = vunpack.c.h.b16 %v392
        %v496 = vunpack.c.l.b16 %v393
        %v497 = vunpack.c.h.b16 %v393
        %v498 = vunpack.c.l.b16 %v394
        %v499 = vunpack.c.h.b16 %v394
        %v500 = vunpack.c.l.b16 %v395
        %v501 = vunpack.c.h.b16 %v395
        %v502 = vunpack.c.l.b16 %v396
        %v503 = vunpack.c.h.b16 %v396
        %v504 = vpack.c.b16 %v442, %v440
        %v505 = vpack.c.b16 %v443, %v441
        %v506 = vpack.c.b16 %v446, %v444
        %v507 = vpack.c.b16 %v447, %v445
        %v508 = vpack.c.b16 %v450, %v448
        %v509 = vpack.c.b16 %v451, %v449
        %v510 = vpack.c.b16 %v454, %v452
        %v511 = vpack.c.b16 %v455, %v453
        %v512 = vpack.c.b16 %v458, %v456
        %v513 = vpack.c.b16 %v459, %v457
        %v514 = vpack.c.b16 %v462, %v460
        %v515 = vpack.c.b16 %v463, %v461
        %v516 = vpack.c.b16 %v466, %v464
        %v517 = vpack.c.b16 %v467, %v465
        %v518 = vpack.c.b16 %v470, %v468
        %v519 = vpack.c.b16 %v471, %v469
        %v520 = vpack.c.b16 %v474, %v472
        %v521 = vpack.c.b16 %v475, %v473
        %v522 = vpack.c.b16 %v478, %v476
        %v523 = vpack.c.b16 %v479, %v477
        %v524 = vpack.c.b16 %v482, %v480
        %v525 = vpack.c.b16 %v483, %v481
        %v526 = vpack.c.b16 %v486, %v484
        %v527 = vpack.c.b16 %v487, %v485
        %v528 = vpack.c.b16 %v490, %v488
        %v529 = vpack.c.b16 %v491, %v489
        %v530 = vpack.c.b16 %v494, %v492
        %v531 = vpack.c.b16 %v495, %v493
        %v532 = vpack.c.b16 %v498, %v496
        %v533 = vpack.c.b16 %v499, %v497
        %v534 = vpack.c.b16 %v502, %v500
        %v535 = vpack.c.b16 %v503, %v501
        %568 = vmatprep.subr.bf16.mxu0 %v505
        %569 = vmatpush1.bf16.msra.mxu0 %v504
        %570 = vmatprep.subr.bf16.mxu0 %v507
        %571 = vmatpush1.bf16.msra.mxu0 %v506
        %572 = vmatprep.subr.bf16.mxu0 %v509
        %573 = vmatpush1.bf16.msra.mxu0 %v508
        %574 = vmatprep.subr.bf16.mxu0 %v511
        %575 = vmatpush1.bf16.msra.mxu0 %v510
        %576 = vmatprep.subr.bf16.mxu0 %v513
        %577 = vmatpush1.bf16.msra.mxu0 %v512
        %578 = vmatprep.subr.bf16.mxu0 %v515
        %579 = vmatpush1.bf16.msra.mxu0 %v514
        %580 = vmatprep.subr.bf16.mxu0 %v517
        %581 = vmatpush1.bf16.msra.mxu0 %v516
        %582 = vmatprep.subr.bf16.mxu0 %v519
        %583 = vmatpush1.bf16.msra.mxu0 %v518
        %584 = vmatprep.subr.bf16.mxu0 %v521
        %585 = vmatpush1.bf16.msra.mxu0 %v520
        %586 = vmatprep.subr.bf16.mxu0 %v523
        %587 = vmatpush1.bf16.msra.mxu0 %v522
        %588 = vmatprep.subr.bf16.mxu0 %v525
        %589 = vmatpush1.bf16.msra.mxu0 %v524
        %590 = vmatprep.subr.bf16.mxu0 %v527
        %591 = vmatpush1.bf16.msra.mxu0 %v526
        %592 = vmatprep.subr.bf16.mxu0 %v529
        %593 = vmatpush1.bf16.msra.mxu0 %v528
        %594 = vmatprep.subr.bf16.mxu0 %v531
        %595 = vmatpush1.bf16.msra.mxu0 %v530
        %596 = vmatprep.subr.bf16.mxu0 %v533
        %597 = vmatpush1.bf16.msra.mxu0 %v532
        %598 = vmatprep.subr.bf16.mxu0 %v535
        %599 = vmatpush1.bf16.msra.mxu0 %v534
        %600 = vmatprep.mubr.bf16.mxu0 %v364
        %601 = vmatmul.mubr.bf16.gmra.mrb[0].mxu0 %v363
        %v602 = vpop.f32.mrb[0].mxu0
        %v603 = vadd.f32 %v401, %v602
        %v604 = vpop.f32.mrb[0].mxu0
        %v605 = vadd.f32 %v405, %v604
        %v606 = vpop.f32.mrb[0].mxu0
        %v607 = vpop.f32.mrb[0].mxu0
        %608 = vdwg.mxu0
        %v609 = vadd.f32 %v603, %v339
        %v610 = vadd.f32 %v605, %v341
        %v611 = vadd.f32 %v609, %v610
        %612 = vadd.xlane.f32.xlu0 %v611
        %v613 = vpop.xlane.xlu0 %612
        %v614 = vmul.f32 %v609, %v609
        %v615 = vmul.f32 %v610, %v610
        %v616 = vadd.f32 %v614, %v615
        %617 = vadd.xlane.f32.xlu0 %v616
        %v618 = vpop.xlane.xlu0 %617
        %v619 = vmul.f32 %v613, 0.00390625
        %v620 = vmul.f32 %v618, 0.00390625
        %v621 = vmul.f32 %v619, %v619
        %v622 = vsub.f32 %v620, %v621
        %v623 = vmax.f32 %v622, 0.0
        %v624 = vsub.f32 %v609, %v619
        %v625 = vsub.f32 %v610, %v619
        %v626 = vadd.f32 %v623, 1e-05
        %v627 = vrsqrt.pop %v626
        %v628 = vmul.f32 %v624, %v627
        %v629 = vmul.f32 %v625, %v627
        %v631 = vlaneseq
        %v632 = vshrl.u32 %v631, 7
        %v633 = vsub.s32 0, %v632
        %v634 = vrot.slane %v260, %v633
        %v635 = vlaneseq
        %v636 = vshrl.u32 %v635, 7
        %v637 = vsub.s32 1, %v636
        %v638 = vrot.slane %v260, %v637
        %v641 = vmul.f32 %v628, %v634
        %v642 = vmul.f32 %v629, %v638
        %v644 = vlaneseq
        %v645 = vshrl.u32 %v644, 7
        %v646 = vsub.s32 0, %v645
        %v647 = vrot.slane %v262, %v646
        %v648 = vlaneseq
        %v649 = vshrl.u32 %v648, 7
        %v650 = vsub.s32 1, %v649
        %v651 = vrot.slane %v262, %v650
        %v654 = vadd.f32 %v641, %v647
        %v655 = vadd.f32 %v642, %v651
        %656 = vst [vmem:[%s254] sm:$0xff] %v654
        %657 = vst [vmem:[%s254 + $0x8] sm:$0xff] %v655
        %s658 = sand.u32 %s120, 1
        %s659 = scalar_lea.sflag [#allocation4], %s658
        %s660 = sand.u32 %s120, 1
        %s661 = smul.addr %s660, 16
        %s662 = scalar_lea.vmem [#allocation10], %s661
        // Predicated region
        $region53: #{projection_head.1} parent=35 // pred_check
          %p663 = pneg %p130
        $region54: #{projection_head.1} parent=35 // pred_check_branch
          %665 = sbr.rel (%p663) target = $region56
        $region55: #{projection_head.1} parent=35 // pred_region
          %s667 = ssub.s32 256, 256
          %668 = vsyncadd %s659, %s667
          %s669 = smul.addr %s23, 2
          %s670 = smul.addr %s669, 128
          %s671 = scalar_lea.hbm %s4, %s670
          %s673 = sshll.u32 %s662, 4
          %s674 = int_to_ptr.vmem [resolvable:$true] %s673
          %676 = dma.vmem_to_hbm [thread:$0]  %s674, 256, %s671, %s659
        $region56: #{projection_head.1} parent=35 // pred_fallthru
          _
      $region36: #{projection_head.1} parent=5 // pred_fallthru
        _
      %p677 = scmp.le.s32.totalorder 2, %s18
      // Predicated region
      $region57: #{projection_head.1} parent=5 // pred_check
        %p678 = pneg %p677
      $region58: #{projection_head.1} parent=5 // pred_check_branch
        %680 = sbr.rel (%p678) target = $region60
      $region59: #{projection_head.1} parent=5 // pred_region
        %s681 = ssub.s32 %s18, 2
        // Predicated region
        $region61: #{projection_head.1} parent=59 // pred_check
          %p682 = pneg %p136
        $region62: #{projection_head.1} parent=59 // pred_check_branch
          %684 = sbr.rel (%p682) target = $region64
        $region63: #{projection_head.1} parent=59 // pred_region
          %s685 = sand.u32 %s121, 1
          %s686 = scalar_lea.sflag [#allocation4], %s685
          %s687 = sand.u32 %s121, 1
          %s688 = smul.addr %s687, 16
          %s689 = scalar_lea.vmem [#allocation10], %s688
          %690 = dma.done %s686, 256
        $region64: #{projection_head.1} parent=59 // pred_fallthru
          _
      $region60: #{projection_head.1} parent=5 // pred_fallthru
        _
    $region6: #{projection_head.1} parent=1 // loop_footer
      %s22 = sadd.s32 1, %s18
    $region7: #{projection_head.1} parent=1 // loop_footer_branch
      %17 = sbr.rel target = $region3
    $region8: #{projection_head.1} parent=1 // loop_exit
      _
    %691 = vsyncpa [#allocation3], 1
    %s692 = scalar_lea.sflag [#allocation3], 1
    %693 = vsyncpa %s692, 1
    %694 = vsyncpa [#allocation6], 1
    %695 = vsyncpa [#allocation9], 1
    %696 = vsyncpa [#allocation4], 1
    %s697 = scalar_lea.sflag [#allocation4], 1
    %698 = vsyncpa %s697, 1

</llo_original>
